<compile_context>
chip_gen: v7x
topology: tpu7x:2x2x1
jax: 0.10.0
libtpu: 0.0.40
codegen_flags: <defaults>
</compile_context>

<pallas_src>
import functools

import jax
import jax.numpy as jnp
from jax.experimental import pallas as pl
from jax.experimental.pallas import tpu as pltpu


def _round_up(x, m):
    return (x + m - 1) // m * m


def _pad2d(x, rows, cols):
    r, c = x.shape
    if rows == r and cols == c:
        return x
    return jnp.pad(x, ((0, rows - r), (0, cols - c)))


def _sage_layer_kernel(a_ref, h_ref, hdst_ref, ws_ref, wn_ref, b_ref,
                       o_ref, acc_ref, *, apply_relu):
    """One fused SAGEConv('mean') layer tile.

    a_ref   : [tm, tk]        bf16 row-normalized aggregation tile
    h_ref   : [tk, f_in_pad]  bf16 source-feature tile (streamed over K)
    hdst_ref: [tm, f_in_pad]  bf16 dst-feature tile (prefix of h_src; resident per M block)
    ws_ref  : [f_in_pad, tn]  bf16 self projection (resident)
    wn_ref  : [f_in_pad, tn]  bf16 neighbor projection (resident)
    b_ref   : [1, tn]         f32 bias (resident)
    o_ref   : [tm, tn]        f32 output tile (written at last K step)
    acc_ref : [tm, tn]        f32 VMEM accumulator
    """
    k = pl.program_id(2)
    nk = pl.num_programs(2)

    # Fold the self-projection + bias into the accumulator init (done once per output tile).
    @pl.when(k == 0)
    def _init():
        acc_ref[...] = (
            jnp.dot(hdst_ref[...], ws_ref[...], preferred_element_type=jnp.float32)
            + b_ref[...]
        )

    # Neighbor mean aggregation for this K slab, then project; f32 accumulation on the MXU.
    h_neigh = jnp.dot(a_ref[...], h_ref[...], preferred_element_type=jnp.float32)
    acc_ref[...] += jnp.dot(h_neigh.astype(jnp.bfloat16), wn_ref[...],
                            preferred_element_type=jnp.float32)

    @pl.when(k == nk - 1)
    def _finalize():
        out = acc_ref[...]
        if apply_relu:
            out = jnp.maximum(out, 0.0)
        # TODO(synk): nn.Dropout is stochastic (training-only); forward uses eval semantics
        # (identity). Could be added with pltpu.prng_seed / pltpu.stateful_bernoulli.
        o_ref[...] = out.astype(o_ref.dtype)


def sage_layer(a_mean, h_src, w_self, w_neigh, bias, apply_relu,
               tm_max=128, tn_pref=256, tk_max=512):
    n_dst, n_src = a_mean.shape
    assert n_dst <= n_src, "DGL block convention: dst nodes must be a prefix of src nodes"
    f_in = h_src.shape[1]
    f_out = w_self.shape[1]

    # ---- padded / tiled dims (lane = 128, bf16-friendly sublane = 16) ----
    if n_dst <= tm_max:
        n_dst_pad = _round_up(n_dst, 16)
        tm = n_dst_pad
    else:
        n_dst_pad = _round_up(n_dst, tm_max)
        tm = tm_max
    if n_src <= tk_max:
        n_src_pad = _round_up(n_src, 128)
        tk = n_src_pad
    else:
        n_src_pad = _round_up(n_src, tk_max)
        tk = tk_max
    f_in_pad = _round_up(f_in, 128)
    f_out_pad = _round_up(f_out, 128)
    tn = tn_pref if f_out_pad % tn_pref == 0 else 128  # 256-wide N when possible (v6e/v7x MXU)

    # ---- bf16 operands (f32 accumulation inside the kernel), zero-padded ----
    a_p = _pad2d(a_mean, n_dst_pad, n_src_pad).astype(jnp.bfloat16)
    h_p = _pad2d(h_src, n_src_pad, f_in_pad).astype(jnp.bfloat16)
    ws_p = _pad2d(w_self, f_in_pad, f_out_pad).astype(jnp.bfloat16)
    wn_p = _pad2d(w_neigh, f_in_pad, f_out_pad).astype(jnp.bfloat16)
    b_p = _pad2d(bias, 1, f_out_pad).astype(jnp.float32)

    grid = (n_dst_pad // tm, f_out_pad // tn, n_src_pad // tk)
    nk = grid[2]

    flops = (2 * n_dst_pad * n_src_pad * f_in_pad               # A @ H
             + 2 * n_dst_pad * f_in_pad * f_out_pad * nk        # per-K neighbor projection
             + 2 * n_dst_pad * f_in_pad * f_out_pad)            # self projection
    bytes_accessed = (a_p.size * 2 + h_p.size * 2 * 2 + ws_p.size * 2 + wn_p.size * 2
                      + b_p.size * 4 + n_dst_pad * f_out_pad * 4)
    cost = pl.CostEstimate(flops=flops, transcendentals=0, bytes_accessed=bytes_accessed)

    kernel = functools.partial(_sage_layer_kernel, apply_relu=apply_relu)

    out_pad = pl.pallas_call(
        kernel,
        out_shape=jax.ShapeDtypeStruct((n_dst_pad, f_out_pad), jnp.float32),
        grid_spec=pltpu.PrefetchScalarGridSpec(
            num_scalar_prefetch=0,
            grid=grid,
            in_specs=[
                pl.BlockSpec((tm, tk), lambda i, j, k: (i, k)),          # A       (streamed K)
                pl.BlockSpec((tk, f_in_pad), lambda i, j, k: (k, 0)),    # h_src   (streamed K)
                pl.BlockSpec((tm, f_in_pad), lambda i, j, k: (i, 0)),    # h_dst   (resident per i)
                pl.BlockSpec((f_in_pad, tn), lambda i, j, k: (0, j)),    # W_self  (resident per j)
                pl.BlockSpec((f_in_pad, tn), lambda i, j, k: (0, j)),    # W_neigh (resident per j)
                pl.BlockSpec((1, tn), lambda i, j, k: (0, j)),           # bias    (resident per j)
            ],
            out_specs=pl.BlockSpec((tm, tn), lambda i, j, k: (i, j)),
            scratch_shapes=[pltpu.VMEM((tm, tn), jnp.float32)],
        ),
        compiler_params=pltpu.CompilerParams(
            dimension_semantics=("parallel", "parallel", "arbitrary"),
            vmem_limit_bytes=48 * 1024 * 1024,
        ),
        cost_estimate=cost,
    )(a_p, h_p, h_p, ws_p, wn_p, b_p)

    return out_pad[:n_dst, :f_out]


class DistSAGE:
    """JAX/Pallas port of the DGL DistSAGE module (forward pass, eval-mode dropout)."""

    def __init__(self, in_feats, n_hidden, n_classes, n_layers, key):
        self.n_layers = n_layers
        dims = [in_feats] + [n_hidden] * (n_layers - 1) + [n_classes]
        self.params = []
        for l in range(n_layers):
            f_in, f_out = dims[l], dims[l + 1]
            key, k1, k2 = jax.random.split(key, 3)
            scale = 1.0 / jnp.sqrt(jnp.float32(f_in))
            w_self = jax.random.normal(k1, (f_in, f_out), jnp.float32) * scale
            w_neigh = jax.random.normal(k2, (f_in, f_out), jnp.float32) * scale
            b = jnp.zeros((1, f_out), jnp.float32)
            self.params.append((w_self, w_neigh, b))

    def __call__(self, blocks, x):
        h = x
        for l, (a_mean, (w_self, w_neigh, b)) in enumerate(zip(blocks, self.params)):
            apply_relu = l != self.n_layers - 1
            h = sage_layer(a_mean, h, w_self, w_neigh, b, apply_relu)
        return h


def make_mean_block(key, n_dst, n_src, edge_prob=0.3):
    """Dense row-normalized adjacency emulating a DGL sampled block (dst prefix + self loops)."""
    # TODO(synk): production path should use sparse CSR indices via scalar prefetch instead of
    # a dense aggregation matrix.
    adj = (jax.random.uniform(key, (n_dst, n_src)) < edge_prob).astype(jnp.float32)
    adj = adj.at[jnp.arange(n_dst), jnp.arange(n_dst)].set(1.0)  # no zero-degree rows
    deg = jnp.sum(adj, axis=1, keepdims=True)
    return adj / deg


if __name__ == "__main__":
    key = jax.random.PRNGKey(0)
    kx, kb0, kb1, kp = jax.random.split(key, 4)

    # Small synthetic problem consistent with the module:
    in_feats, n_hidden, n_classes, n_layers = 32, 32, 8, 2
    n_src0, n_dst0 = 64, 32   # layer-0 block: 64 src nodes -> 32 dst nodes
    n_src1, n_dst1 = 32, 16   # layer-1 block: 32 src nodes -> 16 dst nodes

    x = jax.random.normal(kx, (n_src0, in_feats), jnp.float32)
    blocks = [
        make_mean_block(kb0, n_dst0, n_src0),
        make_mean_block(kb1, n_dst1, n_src1),
    ]

    model = DistSAGE(in_feats, n_hidden, n_classes, n_layers, kp)

    out = model(blocks, x)
    out = jax.block_until_ready(out)
    assert out.shape == (n_dst1, n_classes), out.shape

    # Pure-JAX f32 reference of the same semantics (kernel uses bf16 inputs -> looser tolerance).
    def ref_forward(blocks, x, params):
        h = x
        for l, (a, (ws, wn, b)) in enumerate(zip(blocks, params)):
            h_neigh = a @ h
            h_dst = h[: a.shape[0]]
            h = h_dst @ ws + h_neigh @ wn + b
            if l != len(params) - 1:
                h = jnp.maximum(h, 0.0)
        return h

    ref = ref_forward(blocks, x, model.params)
    assert jnp.allclose(out, ref, atol=5e-2, rtol=5e-2), float(jnp.max(jnp.abs(out - ref)))

    print("KERNEL_OK")
</pallas_src>

<mosaic_0001>
module attributes {stable_mosaic.version = 11 : i64} {
  func.func @_sage_layer_kernel(%arg0: i32, %arg1: i32, %arg2: i32, %arg3: memref<32x128xbf16, #tpu.memory_space<vmem>>, %arg4: memref<128x128xbf16, #tpu.memory_space<vmem>>, %arg5: memref<32x128xbf16, #tpu.memory_space<vmem>>, %arg6: memref<128x128xbf16, #tpu.memory_space<vmem>>, %arg7: memref<128x128xbf16, #tpu.memory_space<vmem>>, %arg8: memref<1x128xf32, #tpu.memory_space<vmem>>, %arg9: memref<32x128xf32, #tpu.memory_space<vmem>>, %arg10: memref<32x128xf32, #tpu.memory_space<vmem>>) attributes {dimension_semantics = [#tpu.dimension_semantics<parallel>, #tpu.dimension_semantics<parallel>, #tpu.dimension_semantics<arbitrary>], iteration_bounds = array<i64: 1, 1, 1>, scalar_prefetch = 0 : i64, scratch_operands = 1 : i64, tpu.core_type = #tpu.core_type<tc>, window_params = [{transform_indices = @transform_0, window_bounds = array<i64: 32, 128>}, {transform_indices = @transform_1, window_bounds = array<i64: 128, 128>}, {transform_indices = @transform_2, window_bounds = array<i64: 32, 128>}, {transform_indices = @transform_3, window_bounds = array<i64: 128, 128>}, {transform_indices = @transform_4, window_bounds = array<i64: 128, 128>}, {transform_indices = @transform_5, window_bounds = array<i64: 1, 128>}, {transform_indices = @transform_6, window_bounds = array<i64: 32, 128>}]} {
    %c0_i32 = arith.constant 0 : i32
    %0 = arith.cmpi eq, %arg2, %c0_i32 : i32
    %1 = arith.extui %0 : i1 to i32
    %c0_i32_0 = arith.constant 0 : i32
    %2 = arith.cmpi ne, %1, %c0_i32_0 : i32
    scf.if %2 {
      %c0_13 = arith.constant 0 : index
      %c0_14 = arith.constant 0 : index
      %15 = vector.load %arg5[%c0_13, %c0_14] : memref<32x128xbf16, #tpu.memory_space<vmem>>, vector<32x128xbf16>
      %c0_15 = arith.constant 0 : index
      %c0_16 = arith.constant 0 : index
      %16 = vector.load %arg6[%c0_15, %c0_16] : memref<128x128xbf16, #tpu.memory_space<vmem>>, vector<128x128xbf16>
      %cst_17 = arith.constant dense<0.000000e+00> : vector<32x128xf32>
      %17 = tpu.matmul %15, %16, %cst_17 {dimension_numbers = #tpu.dot_dimension_numbers<[1], [0], [0], [1], [0, 0, 1, 1], [], []>} : vector<32x128xbf16>, vector<128x128xbf16>, vector<32x128xf32> -> vector<32x128xf32>
      %c0_18 = arith.constant 0 : index
      %c0_19 = arith.constant 0 : index
      %18 = vector.load %arg8[%c0_18, %c0_19] : memref<1x128xf32, #tpu.memory_space<vmem>>, vector<1x128xf32>
      %19 = vector.broadcast %18 : vector<1x128xf32> to vector<32x128xf32>
      %20 = arith.addf %17, %19 : vector<32x128xf32>
      %c0_20 = arith.constant 0 : index
      %c0_21 = arith.constant 0 : index
      %21 = vector.load %arg10[%c0_20, %c0_21] : memref<32x128xf32, #tpu.memory_space<vmem>>, vector<32x128xf32>
      tpu.vector_store %arg10[%c0_20, %c0_21], %20 {strides = array<i32>} : memref<32x128xf32, #tpu.memory_space<vmem>>, vector<32x128xf32>,
    } else {
    }
    %c0 = arith.constant 0 : index
    %c0_1 = arith.constant 0 : index
    %3 = vector.load %arg3[%c0, %c0_1] : memref<32x128xbf16, #tpu.memory_space<vmem>>, vector<32x128xbf16>
    %c0_2 = arith.constant 0 : index
    %c0_3 = arith.constant 0 : index
    %4 = vector.load %arg4[%c0_2, %c0_3] : memref<128x128xbf16, #tpu.memory_space<vmem>>, vector<128x128xbf16>
    %cst = arith.constant dense<0.000000e+00> : vector<32x128xf32>
    %5 = tpu.matmul %3, %4, %cst {dimension_numbers = #tpu.dot_dimension_numbers<[1], [0], [0], [1], [0, 0, 1, 1], [], []>} : vector<32x128xbf16>, vector<128x128xbf16>, vector<32x128xf32> -> vector<32x128xf32>
    %c0_4 = arith.constant 0 : index
    %c0_5 = arith.constant 0 : index
    %6 = vector.load %arg10[%c0_4, %c0_5] : memref<32x128xf32, #tpu.memory_space<vmem>>, vector<32x128xf32>
    %7 = arith.truncf %5 : vector<32x128xf32> to vector<32x128xbf16>
    %c0_6 = arith.constant 0 : index
    %c0_7 = arith.constant 0 : index
    %8 = vector.load %arg7[%c0_6, %c0_7] : memref<128x128xbf16, #tpu.memory_space<vmem>>, vector<128x128xbf16>
    %cst_8 = arith.constant dense<0.000000e+00> : vector<32x128xf32>
    %9 = tpu.matmul %7, %8, %cst_8 {dimension_numbers = #tpu.dot_dimension_numbers<[1], [0], [0], [1], [0, 0, 1, 1], [], []>} : vector<32x128xbf16>, vector<128x128xbf16>, vector<32x128xf32> -> vector<32x128xf32>
    %10 = arith.addf %6, %9 : vector<32x128xf32>
    %c0_9 = arith.constant 0 : index
    %c0_10 = arith.constant 0 : index
    %11 = vector.load %arg10[%c0_9, %c0_10] : memref<32x128xf32, #tpu.memory_space<vmem>>, vector<32x128xf32>
    tpu.vector_store %arg10[%c0_9, %c0_10], %10 {strides = array<i32>} : memref<32x128xf32, #tpu.memory_space<vmem>>, vector<32x128xf32>,
    %c0_i32_11 = arith.constant 0 : i32
    %12 = arith.cmpi eq, %arg2, %c0_i32_11 : i32
    %13 = arith.extui %12 : i1 to i32
    %c0_i32_12 = arith.constant 0 : i32
    %14 = arith.cmpi ne, %13, %c0_i32_12 : i32
    scf.if %14 {
      %c0_13 = arith.constant 0 : index
      %c0_14 = arith.constant 0 : index
      %15 = vector.load %arg10[%c0_13, %c0_14] : memref<32x128xf32, #tpu.memory_space<vmem>>, vector<32x128xf32>
      %cst_15 = arith.constant 0.000000e+00 : f32
      %16 = vector.broadcast %cst_15 : f32 to vector<32x128xf32>
      %17 = arith.maximumf %15, %16 : vector<32x128xf32>
      %c0_16 = arith.constant 0 : index
      %c0_17 = arith.constant 0 : index
      %18 = vector.load %arg9[%c0_16, %c0_17] : memref<32x128xf32, #tpu.memory_space<vmem>>, vector<32x128xf32>
      tpu.vector_store %arg9[%c0_16, %c0_17], %17 {strides = array<i32>} : memref<32x128xf32, #tpu.memory_space<vmem>>, vector<32x128xf32>,
    } else {
    }
    return
  }
  func.func @transform_0(%arg0: i32, %arg1: i32, %arg2: i32) -> (i32, i32) {
    %c0_i32 = arith.constant 0 : i32
    return %arg0, %arg2 : i32, i32
  }
  func.func @transform_1(%arg0: i32, %arg1: i32, %arg2: i32) -> (i32, i32) {
    %c0_i32 = arith.constant 0 : i32
    %c0_i32_0 = arith.constant 0 : i32
    return %arg2, %c0_i32 : i32, i32
  }
  func.func @transform_2(%arg0: i32, %arg1: i32, %arg2: i32) -> (i32, i32) {
    %c0_i32 = arith.constant 0 : i32
    %c0_i32_0 = arith.constant 0 : i32
    return %arg0, %c0_i32 : i32, i32
  }
  func.func @transform_3(%arg0: i32, %arg1: i32, %arg2: i32) -> (i32, i32) {
    %c0_i32 = arith.constant 0 : i32
    %c0_i32_0 = arith.constant 0 : i32
    return %c0_i32, %arg1 : i32, i32
  }
  func.func @transform_4(%arg0: i32, %arg1: i32, %arg2: i32) -> (i32, i32) {
    %c0_i32 = arith.constant 0 : i32
    %c0_i32_0 = arith.constant 0 : i32
    return %c0_i32, %arg1 : i32, i32
  }
  func.func @transform_5(%arg0: i32, %arg1: i32, %arg2: i32) -> (i32, i32) {
    %c0_i32 = arith.constant 0 : i32
    %c0_i32_0 = arith.constant 0 : i32
    return %c0_i32, %arg1 : i32, i32
  }
  func.func @transform_6(%arg0: i32, %arg1: i32, %arg2: i32) -> (i32, i32) {
    %c0_i32 = arith.constant 0 : i32
    return %arg0, %arg1 : i32, i32
  }
}

</mosaic_0001>

<llo_original>
// kernel: tpu_custom_call.1
$region0: #{tpu_custom_call.1}
  #allocation0 [shape = 'u32[]', space=smem, size = 0x4, offset = 0x4, fixed_abs, tag = 'smem constant byte address 0x4 - core index']
  #allocation1 [shape = 'u32[144,128]{1,0:T(1,128)}', space=vmem, size = 0x12000, scoped, tag = 'internal scratch']
  #allocation2 [shape = 'f32[32,128]{1,0:T(8,128)}', space=vmem, size = 0x4000, scoped, tag = 'scratch operand']
  %s0 = inlined_call_operand.hbm [shape: bf16[32,128], index: 0, kind: input, shape index: {}]
  %s1 = inlined_call_operand.hbm [shape: bf16[128,128], index: 1, kind: input, shape index: {}]
  %s2 = inlined_call_operand.hbm [shape: bf16[128,128], index: 2, kind: input, shape index: {}]
  %s3 = inlined_call_operand.hbm [shape: bf16[128,128], index: 3, kind: input, shape index: {}]
  %s4 = inlined_call_operand.hbm [shape: bf16[128,128], index: 4, kind: input, shape index: {}]
  %s5 = inlined_call_operand.vmem [shape: f32[1,128], index: 5, kind: input, shape index: {}]
  %s6 = inlined_call_operand.hbm [shape: f32[32,128], index: 6, kind: output, shape index: {}]
  %s7 = sld [smem:[#allocation0]]
  $region62: #{tpu_custom_call.1} parent=0
    _
  %s9 = ssub.s32 1, %s7
  %s10 = scalar_select 0, %s9, %s7
  $region1: #{tpu_custom_call.1} parent=0
    #allocation3 [shape = 'u8[8192]{0}', space=vmem, size = 0x2000, scoped, tag = 'input window, operand 0, single buffered']
    #allocation4 [shape = 's32[1]{0}', space=sflag, size = 0x4, scoped, tag = 'scoped memory for tpu_custom_call.1']
    #allocation5 [shape = 's32[1]{0}', space=sflag, size = 0x4, scoped, tag = 'scoped memory for tpu_custom_call.1']
    #allocation6 [shape = 'u8[32768]{0}', space=vmem, size = 0x8000, scoped, tag = 'input window, operand 1, single buffered']
    #allocation7 [shape = 's32[1]{0}', space=sflag, size = 0x4, scoped, tag = 'scoped memory for tpu_custom_call.1']
    #allocation8 [shape = 'u8[8192]{0}', space=vmem, size = 0x2000, scoped, tag = 'input window, operand 2, single buffered']
    #allocation9 [shape = 'u8[32768]{0}', space=vmem, size = 0x8000, scoped, tag = 'input window, operand 3, single buffered']
    #allocation10 [shape = 's32[1]{0}', space=sflag, size = 0x4, scoped, tag = 'scoped memory for tpu_custom_call.1']
    #allocation11 [shape = 'u8[32768]{0}', space=vmem, size = 0x8000, scoped, tag = 'input window, operand 4, single buffered']
    #allocation12 [shape = 'u8[16384]{0}', space=vmem, size = 0x4000, scoped, tag = 'output window, operand 0, single buffered']
    %11 = vsyncpa [#allocation4], 0
    %12 = vsyncpa [#allocation7], 0
    %13 = vsyncpa [#allocation10], 0
    %14 = vsyncpa [#allocation5], 0
    // Predicated region
    $region2: #{tpu_custom_call.1} parent=1 // pred_check
      _
    $region3: #{tpu_custom_call.1} parent=1 // pred_check_branch
      %16 = sbr.rel (0) target = $region5
    $region4: #{tpu_custom_call.1} parent=1 // pred_region
      %s18 = ssub.s32 256, 256
      %19 = vsyncadd [#allocation4], %s18
      %s20 = sshll.u32 [#allocation3], 4
      %s21 = int_to_ptr.vmem [resolvable:$true] %s20
      %26 = dma.hbm_to_vmem [thread:$0]  %s0, 256, %s21, [#allocation4], 64, 64, 4
    $region5: #{tpu_custom_call.1} parent=1 // pred_fallthru
      _
    // Predicated region
    $region6: #{tpu_custom_call.1} parent=1 // pred_check
      _
    $region7: #{tpu_custom_call.1} parent=1 // pred_check_branch
      %28 = sbr.rel (0) target = $region9
    $region8: #{tpu_custom_call.1} parent=1 // pred_region
      %s30 = ssub.s32 1024, 1024
      %31 = vsyncadd [#allocation7], %s30
      %s32 = sshll.u32 [#allocation6], 4
      %s33 = int_to_ptr.vmem [resolvable:$true] %s32
      %38 = dma.hbm_to_vmem [thread:$0]  %s1, 1024, %s33, [#allocation7], 64, 64, 4
    $region9: #{tpu_custom_call.1} parent=1 // pred_fallthru
      _
    // Predicated region
    $region10: #{tpu_custom_call.1} parent=1 // pred_check
      _
    $region11: #{tpu_custom_call.1} parent=1 // pred_check_branch
      %40 = sbr.rel (0) target = $region13
    $region12: #{tpu_custom_call.1} parent=1 // pred_region
      %s42 = ssub.s32 256, 256
      %43 = vsyncadd [#allocation7], %s42
      %s44 = sshll.u32 [#allocation8], 4
      %s45 = int_to_ptr.vmem [resolvable:$true] %s44
      %50 = dma.hbm_to_vmem [thread:$0]  %s2, 256, %s45, [#allocation7], 64, 64, 4
    $region13: #{tpu_custom_call.1} parent=1 // pred_fallthru
      _
    // Predicated region
    $region14: #{tpu_custom_call.1} parent=1 // pred_check
      _
    $region15: #{tpu_custom_call.1} parent=1 // pred_check_branch
      %52 = sbr.rel (0) target = $region17
    $region16: #{tpu_custom_call.1} parent=1 // pred_region
      %s54 = ssub.s32 1024, 1024
      %55 = vsyncadd [#allocation10], %s54
      %s56 = sshll.u32 [#allocation9], 4
      %s57 = int_to_ptr.vmem [resolvable:$true] %s56
      %62 = dma.hbm_to_vmem [thread:$0]  %s3, 1024, %s57, [#allocation10], 64, 64, 4
    $region17: #{tpu_custom_call.1} parent=1 // pred_fallthru
      _
    // Predicated region
    $region18: #{tpu_custom_call.1} parent=1 // pred_check
      _
    $region19: #{tpu_custom_call.1} parent=1 // pred_check_branch
      %64 = sbr.rel (0) target = $region21
    $region20: #{tpu_custom_call.1} parent=1 // pred_region
      %s66 = ssub.s32 1024, 1024
      %67 = vsyncadd [#allocation10], %s66
      %s68 = sshll.u32 [#allocation11], 4
      %s69 = int_to_ptr.vmem [resolvable:$true] %s68
      %74 = dma.hbm_to_vmem [thread:$0]  %s4, 1024, %s69, [#allocation10], 64, 64, 4
    $region21: #{tpu_custom_call.1} parent=1 // pred_fallthru
      _
    // Predicated region
    $region22: #{tpu_custom_call.1} parent=1 // pred_check
      _
    $region23: #{tpu_custom_call.1} parent=1 // pred_check_branch
      %76 = sbr.rel (0) target = $region25
    $region24: #{tpu_custom_call.1} parent=1 // pred_region
      _
    $region25: #{tpu_custom_call.1} parent=1 // pred_fallthru
      _
    // Predicated region
    $region26: #{tpu_custom_call.1} parent=1 // pred_check
      _
    $region27: #{tpu_custom_call.1} parent=1 // pred_check_branch
      %78 = sbr.rel (0) target = $region29
    $region28: #{tpu_custom_call.1} parent=1 // pred_region
      %79 = dma.done [#allocation4], 256
    $region29: #{tpu_custom_call.1} parent=1 // pred_fallthru
      _
    // Predicated region
    $region30: #{tpu_custom_call.1} parent=1 // pred_check
      _
    $region31: #{tpu_custom_call.1} parent=1 // pred_check_branch
      %81 = sbr.rel (0) target = $region33
    $region32: #{tpu_custom_call.1} parent=1 // pred_region
      %82 = dma.done [#allocation7], 1024
    $region33: #{tpu_custom_call.1} parent=1 // pred_fallthru
      _
    // Predicated region
    $region34: #{tpu_custom_call.1} parent=1 // pred_check
      _
    $region35: #{tpu_custom_call.1} parent=1 // pred_check_branch
      %84 = sbr.rel (0) target = $region37
    $region36: #{tpu_custom_call.1} parent=1 // pred_region
      %85 = dma.done [#allocation7], 256
    $region37: #{tpu_custom_call.1} parent=1 // pred_fallthru
      _
    // Predicated region
    $region38: #{tpu_custom_call.1} parent=1 // pred_check
      _
    $region39: #{tpu_custom_call.1} parent=1 // pred_check_branch
      %87 = sbr.rel (0) target = $region41
    $region40: #{tpu_custom_call.1} parent=1 // pred_region
      %88 = dma.done [#allocation10], 1024
    $region41: #{tpu_custom_call.1} parent=1 // pred_fallthru
      _
    // Predicated region
    $region42: #{tpu_custom_call.1} parent=1 // pred_check
      _
    $region43: #{tpu_custom_call.1} parent=1 // pred_check_branch
      %90 = sbr.rel (0) target = $region45
    $region44: #{tpu_custom_call.1} parent=1 // pred_region
      %91 = dma.done [#allocation10], 1024
    $region45: #{tpu_custom_call.1} parent=1 // pred_fallthru
      _
    %p93 = scmp.eq.s32.totalorder 0, 0
    // Predicated region
    $region46: #{tpu_custom_call.1} parent=1 // pred_check
      %p94 = pneg %p93
    $region47: #{tpu_custom_call.1} parent=1 // pred_check_branch
      %96 = sbr.rel (%p94) target = $region49
    $region48: #{tpu_custom_call.1} parent=1 // pred_region
      %v97 = vld [vmem:[#allocation8] sm:$0xf]
      %v98 = vld [vmem:[#allocation8 + $0x4] sm:$0xf]
      %v99 = vld [vmem:[#allocation8 + $0x8] sm:$0xf]
      %v100 = vld [vmem:[#allocation8 + $0xc] sm:$0xf]
      %v101 = vld [vmem:[#allocation9] sm:$0xf]
      %v102 = vld [vmem:[#allocation9 + $0x4] sm:$0xf]
      %v103 = vld [vmem:[#allocation9 + $0x8] sm:$0xf]
      %v104 = vld [vmem:[#allocation9 + $0xc] sm:$0xf]
      %v105 = vld [vmem:[#allocation9 + $0x10] sm:$0xf]
      %v106 = vld [vmem:[#allocation9 + $0x14] sm:$0xf]
      %v107 = vld [vmem:[#allocation9 + $0x18] sm:$0xf]
      %v108 = vld [vmem:[#allocation9 + $0x1c] sm:$0xf]
      %v109 = vld [vmem:[#allocation9 + $0x20] sm:$0xf]
      %v110 = vld [vmem:[#allocation9 + $0x24] sm:$0xf]
      %v111 = vld [vmem:[#allocation9 + $0x28] sm:$0xf]
      %v112 = vld [vmem:[#allocation9 + $0x2c] sm:$0xf]
      %v113 = vld [vmem:[#allocation9 + $0x30] sm:$0xf]
      %v114 = vld [vmem:[#allocation9 + $0x34] sm:$0xf]
      %v115 = vld [vmem:[#allocation9 + $0x38] sm:$0xf]
      %v116 = vld [vmem:[#allocation9 + $0x3c] sm:$0xf]
      %v117 = vld [vmem:[%s5] sm:$0x1]
      %v119 = vlaneseq
      %v120 = vshrl.u32 %v119, 7
      %v121 = vsub.s32 0, %v120
      %v122 = vrot.slane %v117, %v121
      %v128 = vunpack.c.l.b16 %v97
      %v129 = vunpack.c.l.b16 %v98
      %v130 = vunpack.c.l.b16 %v99
      %v131 = vunpack.c.l.b16 %v100
      %v132 = vpack.c.b16 %v129, %v128
      %v133 = vpack.c.b16 %v131, %v130
      %v152 = vunpack.c.l.b16 %v101
      %v153 = vunpack.c.l.b16 %v102
      %v154 = vunpack.c.l.b16 %v103
      %v155 = vunpack.c.l.b16 %v104
      %v156 = vunpack.c.l.b16 %v105
      %v157 = vunpack.c.l.b16 %v106
      %v158 = vunpack.c.l.b16 %v107
      %v159 = vunpack.c.l.b16 %v108
      %v160 = vunpack.c.l.b16 %v109
      %v161 = vunpack.c.l.b16 %v110
      %v162 = vunpack.c.l.b16 %v111
      %v163 = vunpack.c.l.b16 %v112
      %v164 = vunpack.c.l.b16 %v113
      %v165 = vunpack.c.l.b16 %v114
      %v166 = vunpack.c.l.b16 %v115
      %v167 = vunpack.c.l.b16 %v116
      %v168 = vpack.c.b16 %v153, %v152
      %v169 = vpack.c.b16 %v155, %v154
      %v170 = vpack.c.b16 %v157, %v156
      %v171 = vpack.c.b16 %v159, %v158
      %v172 = vpack.c.b16 %v161, %v160
      %v173 = vpack.c.b16 %v163, %v162
      %v174 = vpack.c.b16 %v165, %v164
      %v175 = vpack.c.b16 %v167, %v166
      %184 = vmatprep.subr.bf16.mxu0 0
      %185 = vmatpush1.bf16.msra.mxu0 %v168
      %186 = vmatprep.subr.bf16.mxu0 0
      %187 = vmatpush1.bf16.msra.mxu0 %v169
      %188 = vmatprep.subr.bf16.mxu0 0
      %189 = vmatpush1.bf16.msra.mxu0 %v170
      %190 = vmatprep.subr.bf16.mxu0 0
      %191 = vmatpush1.bf16.msra.mxu0 %v171
      %192 = vmatprep.subr.bf16.mxu0 0
      %193 = vmatpush1.bf16.msra.mxu0 %v172
      %194 = vmatprep.subr.bf16.mxu0 0
      %195 = vmatpush1.bf16.msra.mxu0 %v173
      %196 = vmatprep.subr.bf16.mxu0 0
      %197 = vmatpush1.bf16.msra.mxu0 %v174
      %198 = vmatprep.subr.bf16.mxu0 0
      %199 = vmatpush1.bf16.msra.mxu0 %v175
      %200 = vmatprep.subr.bf16.mxu0 0
      %201 = vmatpush1.bf16.msra.mxu0 0
      %202 = vmatprep.subr.bf16.mxu0 0
      %203 = vmatpush1.bf16.msra.mxu0 0
      %204 = vmatprep.subr.bf16.mxu0 0
      %205 = vmatpush1.bf16.msra.mxu0 0
      %206 = vmatprep.subr.bf16.mxu0 0
      %207 = vmatpush1.bf16.msra.mxu0 0
      %208 = vmatprep.subr.bf16.mxu0 0
      %209 = vmatpush1.bf16.msra.mxu0 0
      %210 = vmatprep.subr.bf16.mxu0 0
      %211 = vmatpush1.bf16.msra.mxu0 0
      %212 = vmatprep.subr.bf16.mxu0 0
      %213 = vmatpush1.bf16.msra.mxu0 0
      %214 = vmatprep.subr.bf16.mxu0 0
      %215 = vmatpush1.bf16.msra.mxu0 0
      %216 = vmatprep.mubr.bf16.mxu0 0
      %217 = vmatmul.mubr.bf16.gmra.mrb[0].mxu0 %v132
      %v218 = vpop.f32.mrb[0].mxu0
      %v219 = vadd.f32 %v122, %v218
      %v220 = vpop.f32.mrb[0].mxu0
      %v221 = vpop.f32.mrb[0].mxu0
      %v222 = vadd.f32 %v122, %v221
      %v223 = vpop.f32.mrb[0].mxu0
      %224 = vmatprep.mubr.bf16.mxu0 0
      %225 = vmatmul.mubr.bf16.gmra.mrb[0].mxu0 %v133
      %v226 = vpop.f32.mrb[0].mxu0
      %v227 = vadd.f32 %v122, %v226
      %v228 = vpop.f32.mrb[0].mxu0
      %v229 = vpop.f32.mrb[0].mxu0
      %v230 = vadd.f32 %v122, %v229
      %v231 = vpop.f32.mrb[0].mxu0
      %232 = vdwg.mxu0
      %233 = vst [vmem:[#allocation2] sm:$0xff] %v219
      %234 = vst [vmem:[#allocation2 + $0x8] sm:$0xff] %v222
      %235 = vst [vmem:[#allocation2 + $0x10] sm:$0xff] %v227
      %236 = vst [vmem:[#allocation2 + $0x18] sm:$0xff] %v230
    $region49: #{tpu_custom_call.1} parent=1 // pred_fallthru
      _
    %v237 = vld [vmem:[#allocation3] sm:$0xf]
    %v238 = vld [vmem:[#allocation3 + $0x4] sm:$0xf]
    %v239 = vld [vmem:[#allocation3 + $0x8] sm:$0xf]
    %v240 = vld [vmem:[#allocation3 + $0xc] sm:$0xf]
    %v241 = vld [vmem:[#allocation6] sm:$0xf]
    %v242 = vld [vmem:[#allocation6 + $0x4] sm:$0xf]
    %v243 = vld [vmem:[#allocation6 + $0x8] sm:$0xf]
    %v244 = vld [vmem:[#allocation6 + $0xc] sm:$0xf]
    %v245 = vld [vmem:[#allocation6 + $0x10] sm:$0xf]
    %v246 = vld [vmem:[#allocation6 + $0x14] sm:$0xf]
    %v247 = vld [vmem:[#allocation6 + $0x18] sm:$0xf]
    %v248 = vld [vmem:[#allocation6 + $0x1c] sm:$0xf]
    %v249 = vld [vmem:[#allocation6 + $0x20] sm:$0xf]
    %v250 = vld [vmem:[#allocation6 + $0x24] sm:$0xf]
    %v251 = vld [vmem:[#allocation6 + $0x28] sm:$0xf]
    %v252 = vld [vmem:[#allocation6 + $0x2c] sm:$0xf]
    %v253 = vld [vmem:[#allocation6 + $0x30] sm:$0xf]
    %v254 = vld [vmem:[#allocation6 + $0x34] sm:$0xf]
    %v255 = vld [vmem:[#allocation6 + $0x38] sm:$0xf]
    %v256 = vld [vmem:[#allocation6 + $0x3c] sm:$0xf]
    %v261 = vunpack.c.l.b16 %v237
    %v262 = vunpack.c.l.b16 %v238
    %v263 = vunpack.c.l.b16 %v239
    %v264 = vunpack.c.l.b16 %v240
    %v265 = vpack.c.b16 %v262, %v261
    %v266 = vpack.c.b16 %v264, %v263
    %v285 = vunpack.c.l.b16 %v241
    %v286 = vunpack.c.l.b16 %v242
    %v287 = vunpack.c.l.b16 %v243
    %v288 = vunpack.c.l.b16 %v244
    %v289 = vunpack.c.l.b16 %v245
    %v290 = vunpack.c.l.b16 %v246
    %v291 = vunpack.c.l.b16 %v247
    %v292 = vunpack.c.l.b16 %v248
    %v293 = vunpack.c.l.b16 %v249
    %v294 = vunpack.c.l.b16 %v250
    %v295 = vunpack.c.l.b16 %v251
    %v296 = vunpack.c.l.b16 %v252
    %v297 = vunpack.c.l.b16 %v253
    %v298 = vunpack.c.l.b16 %v254
    %v299 = vunpack.c.l.b16 %v255
    %v300 = vunpack.c.l.b16 %v256
    %v301 = vpack.c.b16 %v286, %v285
    %v302 = vpack.c.b16 %v288, %v287
    %v303 = vpack.c.b16 %v290, %v289
    %v304 = vpack.c.b16 %v292, %v291
    %v305 = vpack.c.b16 %v294, %v293
    %v306 = vpack.c.b16 %v296, %v295
    %v307 = vpack.c.b16 %v298, %v297
    %v308 = vpack.c.b16 %v300, %v299
    %317 = vmatprep.subr.bf16.mxu0 0
    %318 = vmatpush1.bf16.msra.mxu0 %v301
    %319 = vmatprep.subr.bf16.mxu0 0
    %320 = vmatpush1.bf16.msra.mxu0 %v302
    %321 = vmatprep.subr.bf16.mxu0 0
    %322 = vmatpush1.bf16.msra.mxu0 %v303
    %323 = vmatprep.subr.bf16.mxu0 0
    %324 = vmatpush1.bf16.msra.mxu0 %v304
    %325 = vmatprep.subr.bf16.mxu0 0
    %326 = vmatpush1.bf16.msra.mxu0 %v305
    %327 = vmatprep.subr.bf16.mxu0 0
    %328 = vmatpush1.bf16.msra.mxu0 %v306
    %329 = vmatprep.subr.bf16.mxu0 0
    %330 = vmatpush1.bf16.msra.mxu0 %v307
    %331 = vmatprep.subr.bf16.mxu0 0
    %332 = vmatpush1.bf16.msra.mxu0 %v308
    %333 = vmatprep.subr.bf16.mxu0 0
    %334 = vmatpush1.bf16.msra.mxu0 0
    %335 = vmatprep.subr.bf16.mxu0 0
    %336 = vmatpush1.bf16.msra.mxu0 0
    %337 = vmatprep.subr.bf16.mxu0 0
    %338 = vmatpush1.bf16.msra.mxu0 0
    %339 = vmatprep.subr.bf16.mxu0 0
    %340 = vmatpush1.bf16.msra.mxu0 0
    %341 = vmatprep.subr.bf16.mxu0 0
    %342 = vmatpush1.bf16.msra.mxu0 0
    %343 = vmatprep.subr.bf16.mxu0 0
    %344 = vmatpush1.bf16.msra.mxu0 0
    %345 = vmatprep.subr.bf16.mxu0 0
    %346 = vmatpush1.bf16.msra.mxu0 0
    %347 = vmatprep.subr.bf16.mxu0 0
    %348 = vmatpush1.bf16.msra.mxu0 0
    %349 = vmatprep.mubr.bf16.mxu0 0
    %350 = vmatmul.mubr.bf16.gmra.mrb[0].mxu0 %v265
    %v351 = vpop.f32.mrb[0].mxu0
    %v352 = vadd.f32 0.0, %v351
    %v353 = vpop.f32.mrb[0].mxu0
    %v354 = vpop.f32.mrb[0].mxu0
    %v355 = vadd.f32 0.0, %v354
    %v356 = vpop.f32.mrb[0].mxu0
    %357 = vmatprep.mubr.bf16.mxu0 0
    %358 = vmatmul.mubr.bf16.gmra.mrb[0].mxu0 %v266
    %v359 = vpop.f32.mrb[0].mxu0
    %v360 = vadd.f32 0.0, %v359
    %v361 = vpop.f32.mrb[0].mxu0
    %v362 = vpop.f32.mrb[0].mxu0
    %v363 = vadd.f32 0.0, %v362
    %v364 = vpop.f32.mrb[0].mxu0
    %365 = vdwg.mxu0
    %v366 = vld [vmem:[#allocation2] sm:$0xff]
    %v367 = vld [vmem:[#allocation2 + $0x8] sm:$0xff]
    %v368 = vld [vmem:[#allocation2 + $0x10] sm:$0xff]
    %v369 = vld [vmem:[#allocation2 + $0x18] sm:$0xff]
    %v370 = vpack.c.bf16 %v355, %v352
    %v371 = vpack.c.bf16 %v363, %v360
    %v372 = vld [vmem:[#allocation11] sm:$0xf]
    %v373 = vld [vmem:[#allocation11 + $0x4] sm:$0xf]
    %v374 = vld [vmem:[#allocation11 + $0x8] sm:$0xf]
    %v375 = vld [vmem:[#allocation11 + $0xc] sm:$0xf]
    %v376 = vld [vmem:[#allocation11 + $0x10] sm:$0xf]
    %v377 = vld [vmem:[#allocation11 + $0x14] sm:$0xf]
    %v378 = vld [vmem:[#allocation11 + $0x18] sm:$0xf]
    %v379 = vld [vmem:[#allocation11 + $0x1c] sm:$0xf]
    %v380 = vld [vmem:[#allocation11 + $0x20] sm:$0xf]
    %v381 = vld [vmem:[#allocation11 + $0x24] sm:$0xf]
    %v382 = vld [vmem:[#allocation11 + $0x28] sm:$0xf]
    %v383 = vld [vmem:[#allocation11 + $0x2c] sm:$0xf]
    %v384 = vld [vmem:[#allocation11 + $0x30] sm:$0xf]
    %v385 = vld [vmem:[#allocation11 + $0x34] sm:$0xf]
    %v386 = vld [vmem:[#allocation11 + $0x38] sm:$0xf]
    %v387 = vld [vmem:[#allocation11 + $0x3c] sm:$0xf]
    %v404 = vunpack.c.l.b16 %v372
    %v405 = vunpack.c.l.b16 %v373
    %v406 = vunpack.c.l.b16 %v374
    %v407 = vunpack.c.l.b16 %v375
    %v408 = vunpack.c.l.b16 %v376
    %v409 = vunpack.c.l.b16 %v377
    %v410 = vunpack.c.l.b16 %v378
    %v411 = vunpack.c.l.b16 %v379
    %v412 = vunpack.c.l.b16 %v380
    %v413 = vunpack.c.l.b16 %v381
    %v414 = vunpack.c.l.b16 %v382
    %v415 = vunpack.c.l.b16 %v383
    %v416 = vunpack.c.l.b16 %v384
    %v417 = vunpack.c.l.b16 %v385
    %v418 = vunpack.c.l.b16 %v386
    %v419 = vunpack.c.l.b16 %v387
    %v420 = vpack.c.b16 %v405, %v404
    %v421 = vpack.c.b16 %v407, %v406
    %v422 = vpack.c.b16 %v409, %v408
    %v423 = vpack.c.b16 %v411, %v410
    %v424 = vpack.c.b16 %v413, %v412
    %v425 = vpack.c.b16 %v415, %v414
    %v426 = vpack.c.b16 %v417, %v416
    %v427 = vpack.c.b16 %v419, %v418
    %436 = vmatprep.subr.bf16.mxu0 0
    %437 = vmatpush1.bf16.msra.mxu0 %v420
    %438 = vmatprep.subr.bf16.mxu0 0
    %439 = vmatpush1.bf16.msra.mxu0 %v421
    %440 = vmatprep.subr.bf16.mxu0 0
    %441 = vmatpush1.bf16.msra.mxu0 %v422
    %442 = vmatprep.subr.bf16.mxu0 0
    %443 = vmatpush1.bf16.msra.mxu0 %v423
    %444 = vmatprep.subr.bf16.mxu0 0
    %445 = vmatpush1.bf16.msra.mxu0 %v424
    %446 = vmatprep.subr.bf16.mxu0 0
    %447 = vmatpush1.bf16.msra.mxu0 %v425
    %448 = vmatprep.subr.bf16.mxu0 0
    %449 = vmatpush1.bf16.msra.mxu0 %v426
    %450 = vmatprep.subr.bf16.mxu0 0
    %451 = vmatpush1.bf16.msra.mxu0 %v427
    %452 = vmatprep.subr.bf16.mxu0 0
    %453 = vmatpush1.bf16.msra.mxu0 0
    %454 = vmatprep.subr.bf16.mxu0 0
    %455 = vmatpush1.bf16.msra.mxu0 0
    %456 = vmatprep.subr.bf16.mxu0 0
    %457 = vmatpush1.bf16.msra.mxu0 0
    %458 = vmatprep.subr.bf16.mxu0 0
    %459 = vmatpush1.bf16.msra.mxu0 0
    %460 = vmatprep.subr.bf16.mxu0 0
    %461 = vmatpush1.bf16.msra.mxu0 0
    %462 = vmatprep.subr.bf16.mxu0 0
    %463 = vmatpush1.bf16.msra.mxu0 0
    %464 = vmatprep.subr.bf16.mxu0 0
    %465 = vmatpush1.bf16.msra.mxu0 0
    %466 = vmatprep.subr.bf16.mxu0 0
    %467 = vmatpush1.bf16.msra.mxu0 0
    %468 = vmatprep.mubr.bf16.mxu0 0
    %469 = vmatmul.mubr.bf16.gmra.mrb[0].mxu0 %v370
    %v470 = vpop.f32.mrb[0].mxu0
    %v471 = vadd.f32 0.0, %v470
    %v472 = vpop.f32.mrb[0].mxu0
    %v473 = vpop.f32.mrb[0].mxu0
    %v474 = vadd.f32 0.0, %v473
    %v475 = vpop.f32.mrb[0].mxu0
    %476 = vmatprep.mubr.bf16.mxu0 0
    %477 = vmatmul.mubr.bf16.gmra.mrb[0].mxu0 %v371
    %v478 = vpop.f32.mrb[0].mxu0
    %v479 = vadd.f32 0.0, %v478
    %v480 = vpop.f32.mrb[0].mxu0
    %v481 = vpop.f32.mrb[0].mxu0
    %v482 = vadd.f32 0.0, %v481
    %v483 = vpop.f32.mrb[0].mxu0
    %484 = vdwg.mxu0
    %v485 = vadd.f32 %v366, %v471
    %v486 = vadd.f32 %v367, %v474
    %v487 = vadd.f32 %v368, %v479
    %v488 = vadd.f32 %v369, %v482
    %489 = vst [vmem:[#allocation2] sm:$0xff] %v485
    %490 = vst [vmem:[#allocation2 + $0x8] sm:$0xff] %v486
    %491 = vst [vmem:[#allocation2 + $0x10] sm:$0xff] %v487
    %492 = vst [vmem:[#allocation2 + $0x18] sm:$0xff] %v488
    // Predicated region
    $region50: #{tpu_custom_call.1} parent=1 // pred_check
      %p493 = pneg %p93
    $region51: #{tpu_custom_call.1} parent=1 // pred_check_branch
      %495 = sbr.rel (%p493) target = $region53
    $region52: #{tpu_custom_call.1} parent=1 // pred_region
      %v496 = vld [vmem:[#allocation2] sm:$0xff]
      %v497 = vld [vmem:[#allocation2 + $0x8] sm:$0xff]
      %v498 = vld [vmem:[#allocation2 + $0x10] sm:$0xff]
      %v499 = vld [vmem:[#allocation2 + $0x18] sm:$0xff]
      %v500 = vmax.f32 %v496, 0.0
      %v501 = vmax.f32 %v497, 0.0
      %v502 = vmax.f32 %v498, 0.0
      %v503 = vmax.f32 %v499, 0.0
      %504 = vst [vmem:[#allocation12] sm:$0xff] %v500
      %505 = vst [vmem:[#allocation12 + $0x8] sm:$0xff] %v501
      %506 = vst [vmem:[#allocation12 + $0x10] sm:$0xff] %v502
      %507 = vst [vmem:[#allocation12 + $0x18] sm:$0xff] %v503
    $region53: #{tpu_custom_call.1} parent=1 // pred_fallthru
      _
    // Predicated region
    $region54: #{tpu_custom_call.1} parent=1 // pred_check
      _
    $region55: #{tpu_custom_call.1} parent=1 // pred_check_branch
      %509 = sbr.rel (0) target = $region57
    $region56: #{tpu_custom_call.1} parent=1 // pred_region
      %s511 = ssub.s32 512, 512
      %512 = vsyncadd [#allocation5], %s511
      %s513 = sshll.u32 [#allocation12], 4
      %s514 = int_to_ptr.vmem [resolvable:$true] %s513
      %519 = dma.vmem_to_hbm [thread:$0]  %s514, 512, %s6, [#allocation5], 128, 128, 8
    $region57: #{tpu_custom_call.1} parent=1 // pred_fallthru
      _
    // Predicated region
    $region58: #{tpu_custom_call.1} parent=1 // pred_check
      _
    $region59: #{tpu_custom_call.1} parent=1 // pred_check_branch
      %521 = sbr.rel (0) target = $region61
    $region60: #{tpu_custom_call.1} parent=1 // pred_region
      %522 = dma.done [#allocation5], 512
    $region61: #{tpu_custom_call.1} parent=1 // pred_fallthru
      _
    %523 = vsyncpa [#allocation4], 1
    %524 = vsyncpa [#allocation7], 1
    %525 = vsyncpa [#allocation10], 1
    %526 = vsyncpa [#allocation5], 1

</llo_original>
